<compile_context>
chip_gen: v6e
topology: v6e:2x2x1
jax: 0.10.0
libtpu: 0.0.40
codegen_flags: <defaults>
</compile_context>

<pallas_src>
import jax
import jax.numpy as jnp
from jax import lax
from jax.experimental import pallas as pl
from jax.experimental.pallas import tpu as pltpu

_LANE = 128
_SUBLANE = 8

# Byte budget for the double-buffered input streams resident in VMEM at once,
# and the scoped-VMEM limit handed to Mosaic.  24 MiB + ~8 KiB of output
# blocks stays well inside 32 MiB, which is safe on v5e/v6e (128 MiB physical)
# and on v7x (64 MiB physical, 32 MiB default scoped limit).
_VMEM_INPUT_BUDGET_BYTES = 24 * 1024 * 1024
_VMEM_LIMIT_BYTES = 32 * 1024 * 1024


def _num_tensorcores():
    """Best-effort count of TensorCores addressable by one pallas_call."""
    try:
        kind = str(getattr(jax.devices()[0], "device_kind", "")).lower()
    except Exception:  # pragma: no cover - defensive
        return 1
    # v4 / v5p (megacore) and v7x expose 2 TensorCores; v2/v3/v5e/v6e have 1.
    if any(tag in kind for tag in ("v4", "v5p", "v7", "tpu7")):
        return 2
    return 1


def _make_kernel(*, sigma, has_iw, has_ow, rows, tr, gs, nsplit):
    """Kernel specialized on which weight streams exist and the tile shape."""
    sigma2 = float(sigma) * float(sigma)
    thresh = 1.0 / sigma2
    half_over_sigma2 = 0.5 / sigma2      # python-time const: no in-kernel divide
    # If the (nsplit, gs) grid covers exactly `rows` row-blocks worth of data,
    # no tile ever needs masking.
    needs_mask = (nsplit * gs * tr) != rows

    def kernel(*refs):
        it = iter(refs)
        x_ref = next(it)
        t_ref = next(it)
        iw_ref = next(it) if has_iw else None
        ow_ref = next(it) if has_ow else None
        out_ref = next(it)

        c = pl.program_id(0)   # megacore / multi-TC split ("parallel")
        k = pl.program_id(1)   # row-block within the split ("arbitrary")

        @pl.when(k == 0)
        def _():
            out_ref[...] = jnp.zeros_like(out_ref)

        # Cast right after the (possibly narrow-dtype) loads; math in f32
        # (safe on v5e which has no bf16 VPU path).
        val = x_ref[...].astype(jnp.float32) - t_ref[...].astype(jnp.float32)
        if has_iw:
            val = val * iw_ref[...].astype(jnp.float32)
        abs_val = jnp.abs(val)
        loss = jnp.where(
            abs_val < thresh,
            abs_val * abs_val * half_over_sigma2,
            abs_val - half_over_sigma2,
        )
        if has_ow:
            loss = loss * ow_ref[...].astype(jnp.float32)

        def accumulate(vals):
            if tr % _SUBLANE == 0:
                # Sublane-aligned row-only reduction into the resident output
                # block; the cross-lane reduce happens once, in XLA, over the
                # tiny (nsplit, 8, 128) partial-sum result.
                out_ref[...] += vals.reshape(-1, _SUBLANE, _LANE).sum(
                    axis=0, keepdims=True)
            else:
                # Tiny-slab fallback (rows < 8, single block == full slab).
                out_ref[0:1, 0:1, :] += jnp.sum(
                    vals, axis=0, keepdims=True)[None]

        if not needs_mask:
            accumulate(loss)
        else:
            start = (c * gs + k) * tr

            # Interior tiles: cheap path, no iota / select.
            @pl.when(start + tr <= rows)
            def _():
                accumulate(loss)

            # Boundary tile and/or fully-out-of-range clamped duplicate:
            # mask immediately before the reduction (select is applied before
            # any arithmetic can propagate garbage from OOB rows).
            @pl.when(start + tr > rows)
            def _():
                row = lax.broadcasted_iota(jnp.int32, (tr, 1), 0)
                accumulate(jnp.where(row + start < rows, loss, 0.0))

    return kernel


def _make_row_index_map(gs, g):
    last = g - 1

    def index_map(c, k):
        # Clamp so an over-provisioned last slot of a split never issues a
        # fully out-of-bounds DMA; its contribution is masked to zero.
        return (jnp.minimum(c * gs + k, last), 0)

    return index_map


def warp_smooth_l1_loss(
    inputs,
    targets,
    inside_weights=None,
    outside_weights=None,
    *,
    sigma=1.0,
    size_average=True,
    nsplit=None,
    vmem_input_budget_bytes=_VMEM_INPUT_BUDGET_BYTES,
):
    assert inputs.shape == targets.shape
    batch = inputs.shape[0]
    total = int(inputs.size)

    has_iw = inside_weights is not None
    has_ow = outside_weights is not None
    if has_iw:
        assert inside_weights.shape == inputs.shape
    if has_ow:
        assert outside_weights.shape == inputs.shape

    if nsplit is None:
        nsplit = _num_tensorcores()
    nsplit = max(1, int(nsplit))

    sigma2 = float(sigma) * float(sigma)
    thresh = 1.0 / sigma2
    half_over_sigma2 = 0.5 / sigma2

    flats = [inputs.reshape(-1), targets.reshape(-1)]
    if has_iw:
        flats.append(inside_weights.reshape(-1))
    if has_ow:
        flats.append(outside_weights.reshape(-1))

    main = (total // _LANE) * _LANE
    tail = total - main
    rows = main // _LANE

    # <128-element ragged tail handled with a tiny jnp expression so the
    # wrapper never materializes a padded full-array copy of each operand.
    if tail:
        tx = flats[0][main:].astype(jnp.float32)
        tt = flats[1][main:].astype(jnp.float32)
        tval = tx - tt
        idx = 2
        if has_iw:
            tval = tval * flats[idx][main:].astype(jnp.float32)
            idx += 1
        tabs = jnp.abs(tval)
        tloss = jnp.where(
            tabs < thresh,
            tabs * tabs * half_over_sigma2,
            tabs - half_over_sigma2,
        )
        if has_ow:
            tloss = tloss * flats[idx][main:].astype(jnp.float32)
        tail_sum = jnp.sum(tloss)
    else:
        tail_sum = jnp.float32(0.0)

    if rows == 0:
        loss_sum = tail_sum
    else:
        # Lane-dense (rows, 128) slabs in the SOURCE dtype.  The [:main]
        # prefix slice only exists for non-128-divisible element counts.
        operands = [
            (f[:main] if tail else f).reshape(rows, _LANE) for f in flats
        ]

        # --- tile sizing from the VMEM byte budget (double-buffered inputs) ---
        bytes_per_row = 2 * _LANE * sum(
            jnp.dtype(op.dtype).itemsize for op in operands)
        tr_budget = max(
            _SUBLANE,
            (vmem_input_budget_bytes // bytes_per_row) // _SUBLANE * _SUBLANE,
        )

        if rows <= _SUBLANE:
            # Tiny slab: single block equal to the full array dims.
            nsplit = 1
            tr = rows
        else:
            per_split = -(-rows // nsplit)
            tr = min(
                tr_budget,
                max(_SUBLANE, (per_split // _SUBLANE) * _SUBLANE),
            )

        g = -(-rows // tr)            # total row blocks
        gs = -(-g // nsplit)          # row blocks per split

        kernel = _make_kernel(
            sigma=sigma, has_iw=has_iw, has_ow=has_ow,
            rows=rows, tr=tr, gs=gs, nsplit=nsplit,
        )

        in_spec = pl.BlockSpec((tr, _LANE), _make_row_index_map(gs, g))
        out_spec = pl.BlockSpec((1, _SUBLANE, _LANE), lambda c, k: (c, 0, 0))

        partials = pl.pallas_call(
            kernel,
            out_shape=jax.ShapeDtypeStruct(
                (nsplit, _SUBLANE, _LANE), jnp.float32),
            grid_spec=pltpu.PrefetchScalarGridSpec(
                num_scalar_prefetch=0,
                grid=(nsplit, gs),
                in_specs=[in_spec] * len(operands),
                out_specs=out_spec,
            ),
            compiler_params=pltpu.CompilerParams(
                dimension_semantics=("parallel", "arbitrary"),
                vmem_limit_bytes=_VMEM_LIMIT_BYTES,
            ),
        )(*operands)

        loss_sum = jnp.sum(partials) + tail_sum

    # NOTE: size_average=False divides by batch size (inputs.shape[0]), NOT by
    # the element count — this matches the PyTorch module's
    # `torch.sum(loss).div_(inputs.size(0))`.
    denom = total if size_average else batch
    return loss_sum / jnp.float32(denom)


def _reference(inputs, targets, inside_weights, outside_weights, sigma,
               size_average):
    sigma2 = sigma * sigma
    val = (inputs - targets).astype(jnp.float32)
    if inside_weights is not None:
        val = val * inside_weights
    abs_val = jnp.abs(val)
    loss = jnp.where(
        abs_val < 1.0 / sigma2,
        0.5 * abs_val**2 / sigma2,
        abs_val - 0.5 / sigma2,
    )
    if outside_weights is not None:
        loss = loss * outside_weights
    if size_average:
        return jnp.mean(loss)
    return jnp.sum(loss) / inputs.shape[0]


if __name__ == "__main__":
    key = jax.random.PRNGKey(0)
    k1, k2, k3, k4 = jax.random.split(key, 4)

    # NCHW, like the PyTorch module's typical bbox-regression inputs.
    shape = (2, 4, 16, 16)
    inputs = jax.random.normal(k1, shape, dtype=jnp.float32) * 2.0
    targets = jax.random.normal(k2, shape, dtype=jnp.float32) * 2.0
    inside_w = (jax.random.uniform(k3, shape) > 0.3).astype(jnp.float32)
    outside_w = jax.random.uniform(k4, shape, dtype=jnp.float32)

    # 1) weighted, size_average=True
    out = warp_smooth_l1_loss(
        inputs, targets, inside_w, outside_w, sigma=1.0, size_average=True
    )
    out = jax.block_until_ready(out)
    ref = _reference(inputs, targets, inside_w, outside_w, 1.0, True)
    assert jnp.allclose(out, ref, rtol=1e-5, atol=1e-6), (out, ref)

    # 2) unweighted, size_average=False -> only 2 HBM streams are DMA'd and
    #    the VMEM-budget tile sizing automatically doubles the tile rows.
    out2 = warp_smooth_l1_loss(
        inputs, targets, None, None, sigma=3.0, size_average=False
    )
    out2 = jax.block_until_ready(out2)
    ref2 = _reference(inputs, targets, None, None, 3.0, False)
    assert jnp.allclose(out2, ref2, rtol=1e-5, atol=1e-6), (out2, ref2)

    # 3) ragged row count (rows % 8 != 0) exercising the boundary-only
    #    pl.when mask path (and the clamped duplicate block when nsplit=2).
    shape3 = (2, 4, 16, 18)
    j1, j2, j3, j4 = jax.random.split(jax.random.PRNGKey(1), 4)
    x3 = jax.random.normal(j1, shape3, dtype=jnp.float32)
    t3 = jax.random.normal(j2, shape3, dtype=jnp.float32)
    iw3 = jax.random.uniform(j3, shape3, dtype=jnp.float32)
    ow3 = jax.random.uniform(j4, shape3, dtype=jnp.float32)
    out3 = warp_smooth_l1_loss(
        x3, t3, iw3, ow3, sigma=2.0, size_average=True
    )
    out3 = jax.block_until_ready(out3)
    ref3 = _reference(x3, t3, iw3, ow3, 2.0, True)
    assert jnp.allclose(out3, ref3, rtol=1e-5, atol=1e-6), (out3, ref3)

    # 4) element count NOT divisible by 128: exercises the jnp tail fold and
    #    the tiny-slab (rows < 8) kernel path with no wrapper-side padding.
    shape4 = (2, 3, 67)   # 402 elements -> 3 slab rows + 18-element tail
    m1, m2, m3, m4 = jax.random.split(jax.random.PRNGKey(2), 4)
    x4 = jax.random.normal(m1, shape4, dtype=jnp.float32)
    t4 = jax.random.normal(m2, shape4, dtype=jnp.float32)
    iw4 = jax.random.uniform(m3, shape4, dtype=jnp.float32)
    ow4 = jax.random.uniform(m4, shape4, dtype=jnp.float32)
    out4 = warp_smooth_l1_loss(
        x4, t4, iw4, ow4, sigma=1.5, size_average=False
    )
    out4 = jax.block_until_ready(out4)
    ref4 = _reference(x4, t4, iw4, ow4, 1.5, False)
    assert jnp.allclose(out4, ref4, rtol=1e-5, atol=1e-6), (out4, ref4)

    print("KERNEL_OK")
</pallas_src>

<mosaic_0001>
module attributes {stable_mosaic.version = 11 : i64} {
  func.func @kernel(%arg0: i32, %arg1: i32, %arg2: memref<16x128xf32, #tpu.memory_space<vmem>>, %arg3: memref<16x128xf32, #tpu.memory_space<vmem>>, %arg4: memref<16x128xf32, #tpu.memory_space<vmem>>, %arg5: memref<16x128xf32, #tpu.memory_space<vmem>>, %arg6: memref<1x8x128xf32, #tpu.memory_space<vmem>>) attributes {dimension_semantics = [#tpu.dimension_semantics<parallel>, #tpu.dimension_semantics<arbitrary>], iteration_bounds = array<i64: 1, 1>, scalar_prefetch = 0 : i64, scratch_operands = 0 : i64, tpu.core_type = #tpu.core_type<tc>, window_params = [{transform_indices = @transform_0, window_bounds = array<i64: 16, 128>}, {transform_indices = @transform_1, window_bounds = array<i64: 16, 128>}, {transform_indices = @transform_2, window_bounds = array<i64: 16, 128>}, {transform_indices = @transform_3, window_bounds = array<i64: 16, 128>}, {transform_indices = @transform_4, window_bounds = array<i64: 1, 8, 128>}]} {
    %c0_i32 = arith.constant 0 : i32
    %0 = arith.cmpi eq, %arg1, %c0_i32 : i32
    %1 = arith.extui %0 : i1 to i32
    %c0_i32_0 = arith.constant 0 : i32
    %2 = arith.cmpi ne, %1, %c0_i32_0 : i32
    scf.if %2 {
      %cst_17 = arith.constant 0.000000e+00 : f32
      %25 = vector.broadcast %cst_17 : f32 to vector<1x8x128xf32>
      %c0_18 = arith.constant 0 : index
      %c0_19 = arith.constant 0 : index
      %c0_20 = arith.constant 0 : index
      %26 = vector.load %arg6[%c0_18, %c0_19, %c0_20] : memref<1x8x128xf32, #tpu.memory_space<vmem>>, vector<1x8x128xf32>
      tpu.vector_store %arg6[%c0_18, %c0_19, %c0_20], %25 {strides = array<i32>} : memref<1x8x128xf32, #tpu.memory_space<vmem>>, vector<1x8x128xf32>,
    } else {
    }
    %c0 = arith.constant 0 : index
    %c0_1 = arith.constant 0 : index
    %3 = vector.load %arg2[%c0, %c0_1] : memref<16x128xf32, #tpu.memory_space<vmem>>, vector<16x128xf32>
    %c0_2 = arith.constant 0 : index
    %c0_3 = arith.constant 0 : index
    %4 = vector.load %arg3[%c0_2, %c0_3] : memref<16x128xf32, #tpu.memory_space<vmem>>, vector<16x128xf32>
    %5 = arith.subf %3, %4 : vector<16x128xf32>
    %c0_4 = arith.constant 0 : index
    %c0_5 = arith.constant 0 : index
    %6 = vector.load %arg4[%c0_4, %c0_5] : memref<16x128xf32, #tpu.memory_space<vmem>>, vector<16x128xf32>
    %7 = arith.mulf %5, %6 : vector<16x128xf32>
    %8 = math.absf %7 : vector<16x128xf32>
    %cst = arith.constant 1.000000e+00 : f32
    %9 = vector.broadcast %cst : f32 to vector<16x128xf32>
    %10 = arith.cmpf olt, %8, %9 : vector<16x128xf32>
    %11 = arith.mulf %8, %8 : vector<16x128xf32>
    %cst_6 = arith.constant 5.000000e-01 : f32
    %12 = vector.broadcast %cst_6 : f32 to vector<16x128xf32>
    %13 = arith.mulf %11, %12 : vector<16x128xf32>
    %cst_7 = arith.constant 5.000000e-01 : f32
    %14 = vector.broadcast %cst_7 : f32 to vector<16x128xf32>
    %15 = arith.subf %8, %14 : vector<16x128xf32>
    %16 = arith.select %10, %13, %15 : vector<16x128xi1>, vector<16x128xf32>
    %c0_8 = arith.constant 0 : index
    %c0_9 = arith.constant 0 : index
    %17 = vector.load %arg5[%c0_8, %c0_9] : memref<16x128xf32, #tpu.memory_space<vmem>>, vector<16x128xf32>
    %18 = arith.mulf %16, %17 : vector<16x128xf32>
    %c0_10 = arith.constant 0 : index
    %c0_11 = arith.constant 0 : index
    %c0_12 = arith.constant 0 : index
    %19 = vector.load %arg6[%c0_10, %c0_11, %c0_12] : memref<1x8x128xf32, #tpu.memory_space<vmem>>, vector<1x8x128xf32>
    %20 = vector.shape_cast %18 : vector<16x128xf32> to vector<2x8x128xf32>
    %cst_13 = arith.constant dense<0.000000e+00> : vector<8x128xf32>
    %21 = vector.multi_reduction <add>, %20, %cst_13 [0] : vector<2x8x128xf32> to vector<8x128xf32>
    %22 = vector.shape_cast %21 : vector<8x128xf32> to vector<1x8x128xf32>
    %23 = arith.addf %19, %22 : vector<1x8x128xf32>
    %c0_14 = arith.constant 0 : index
    %c0_15 = arith.constant 0 : index
    %c0_16 = arith.constant 0 : index
    %24 = vector.load %arg6[%c0_14, %c0_15, %c0_16] : memref<1x8x128xf32, #tpu.memory_space<vmem>>, vector<1x8x128xf32>
    tpu.vector_store %arg6[%c0_14, %c0_15, %c0_16], %23 {strides = array<i32>} : memref<1x8x128xf32, #tpu.memory_space<vmem>>, vector<1x8x128xf32>,
    return
  }
  func.func @transform_0(%arg0: i32, %arg1: i32) -> (i32, i32) {
    %c1_i32 = arith.constant 1 : i32
    %0 = arith.muli %arg0, %c1_i32 : i32
    %1 = arith.addi %0, %arg1 : i32
    %c0_i32 = arith.constant 0 : i32
    %2 = arith.minsi %1, %c0_i32 : i32
    %c0_i32_0 = arith.constant 0 : i32
    %c0_i32_1 = arith.constant 0 : i32
    return %2, %c0_i32_0 : i32, i32
  }
  func.func @transform_1(%arg0: i32, %arg1: i32) -> (i32, i32) {
    %c1_i32 = arith.constant 1 : i32
    %0 = arith.muli %arg0, %c1_i32 : i32
    %1 = arith.addi %0, %arg1 : i32
    %c0_i32 = arith.constant 0 : i32
    %2 = arith.minsi %1, %c0_i32 : i32
    %c0_i32_0 = arith.constant 0 : i32
    %c0_i32_1 = arith.constant 0 : i32
    return %2, %c0_i32_0 : i32, i32
  }
  func.func @transform_2(%arg0: i32, %arg1: i32) -> (i32, i32) {
    %c1_i32 = arith.constant 1 : i32
    %0 = arith.muli %arg0, %c1_i32 : i32
    %1 = arith.addi %0, %arg1 : i32
    %c0_i32 = arith.constant 0 : i32
    %2 = arith.minsi %1, %c0_i32 : i32
    %c0_i32_0 = arith.constant 0 : i32
    %c0_i32_1 = arith.constant 0 : i32
    return %2, %c0_i32_0 : i32, i32
  }
  func.func @transform_3(%arg0: i32, %arg1: i32) -> (i32, i32) {
    %c1_i32 = arith.constant 1 : i32
    %0 = arith.muli %arg0, %c1_i32 : i32
    %1 = arith.addi %0, %arg1 : i32
    %c0_i32 = arith.constant 0 : i32
    %2 = arith.minsi %1, %c0_i32 : i32
    %c0_i32_0 = arith.constant 0 : i32
    %c0_i32_1 = arith.constant 0 : i32
    return %2, %c0_i32_0 : i32, i32
  }
  func.func @transform_4(%arg0: i32, %arg1: i32) -> (i32, i32, i32) {
    %c0_i32 = arith.constant 0 : i32
    %c0_i32_0 = arith.constant 0 : i32
    %c0_i32_1 = arith.constant 0 : i32
    return %arg0, %c0_i32, %c0_i32_0 : i32, i32, i32
  }
}

</mosaic_0001>

<llo_original>
// kernel: tpu_custom_call.1
$region0: #{tpu_custom_call.1}
  #allocation0 [shape = 'u32[]', space=smem, size = 0x4, offset = 0x4, fixed_abs, tag = 'smem constant byte address 0x4 - core index']
  #allocation1 [shape = 'u32[144,128]{1,0:T(1,128)}', space=vmem, size = 0x12000, scoped, tag = 'internal scratch']
  %s0 = inlined_call_operand.hbm [shape: f32[16,128], index: 0, kind: input, shape index: {}]
  %s1 = inlined_call_operand.hbm [shape: f32[16,128], index: 1, kind: input, shape index: {}]
  %s2 = inlined_call_operand.hbm [shape: f32[16,128], index: 2, kind: input, shape index: {}]
  %s3 = inlined_call_operand.hbm [shape: f32[16,128], index: 3, kind: input, shape index: {}]
  %s4 = inlined_call_operand.hbm [shape: f32[1,8,128], index: 4, kind: output, shape index: {}]
  %s5 = sld [smem:[#allocation0]]
  $region46: #{tpu_custom_call.1} parent=0
    _
  %s7 = ssub.s32 1, %s5
  %s8 = scalar_select 0, %s7, %s5
  $region1: #{tpu_custom_call.1} parent=0
    #allocation2 [shape = 'u8[8192]{0}', space=vmem, size = 0x2000, scoped, tag = 'input window, operand 0, single buffered']
    #allocation3 [shape = 's32[1]{0}', space=sflag, size = 0x4, scoped, tag = 'scoped memory for tpu_custom_call.1']
    #allocation4 [shape = 's32[1]{0}', space=sflag, size = 0x4, scoped, tag = 'scoped memory for tpu_custom_call.1']
    #allocation5 [shape = 'u8[8192]{0}', space=vmem, size = 0x2000, scoped, tag = 'input window, operand 1, single buffered']
    #allocation6 [shape = 's32[1]{0}', space=sflag, size = 0x4, scoped, tag = 'scoped memory for tpu_custom_call.1']
    #allocation7 [shape = 'u8[8192]{0}', space=vmem, size = 0x2000, scoped, tag = 'input window, operand 2, single buffered']
    #allocation8 [shape = 'u8[8192]{0}', space=vmem, size = 0x2000, scoped, tag = 'input window, operand 3, single buffered']
    #allocation9 [shape = 's32[1]{0}', space=sflag, size = 0x4, scoped, tag = 'scoped memory for tpu_custom_call.1']
    #allocation10 [shape = 'u8[4096]{0}', space=vmem, size = 0x1000, scoped, tag = 'output window, operand 0, single buffered']
    %9 = vsyncpa [#allocation3], 0
    %10 = vsyncpa [#allocation6], 0
    %11 = vsyncpa [#allocation9], 0
    %12 = vsyncpa [#allocation4], 0
    // Predicated region
    $region2: #{tpu_custom_call.1} parent=1 // pred_check
      _
    $region3: #{tpu_custom_call.1} parent=1 // pred_check_branch
      %14 = sbr.rel (0) target = $region5
    $region4: #{tpu_custom_call.1} parent=1 // pred_region
      %s15 = sadd.s32 0, 0
      %p16 = scmp.lt.s32.totalorder %s15, 0
      %s17 = scalar_select %p16, %s15, 0
      %s18 = smul.u32 2, %s17
      %s20 = ssub.s32 256, 256
      %21 = vsyncadd [#allocation3], %s20
      %s22 = smul.addr %s18, 128
      %s23 = scalar_lea.hbm %s0, %s22
      %s24 = sshll.u32 [#allocation2], 4
      %s25 = int_to_ptr.vmem [resolvable:$true] %s24
      %30 = dma.hbm_to_vmem [thread:$0]  %s23, 256, %s25, [#allocation3], 128, 128, 8
    $region5: #{tpu_custom_call.1} parent=1 // pred_fallthru
      _
    // Predicated region
    $region6: #{tpu_custom_call.1} parent=1 // pred_check
      _
    $region7: #{tpu_custom_call.1} parent=1 // pred_check_branch
      %32 = sbr.rel (0) target = $region9
    $region8: #{tpu_custom_call.1} parent=1 // pred_region
      %s33 = sadd.s32 0, 0
      %p34 = scmp.lt.s32.totalorder %s33, 0
      %s35 = scalar_select %p34, %s33, 0
      %s36 = smul.u32 2, %s35
      %s38 = ssub.s32 256, 256
      %39 = vsyncadd [#allocation6], %s38
      %s40 = smul.addr %s36, 128
      %s41 = scalar_lea.hbm %s1, %s40
      %s42 = sshll.u32 [#allocation5], 4
      %s43 = int_to_ptr.vmem [resolvable:$true] %s42
      %48 = dma.hbm_to_vmem [thread:$0]  %s41, 256, %s43, [#allocation6], 128, 128, 8
    $region9: #{tpu_custom_call.1} parent=1 // pred_fallthru
      _
    // Predicated region
    $region10: #{tpu_custom_call.1} parent=1 // pred_check
      _
    $region11: #{tpu_custom_call.1} parent=1 // pred_check_branch
      %50 = sbr.rel (0) target = $region13
    $region12: #{tpu_custom_call.1} parent=1 // pred_region
      %s51 = sadd.s32 0, 0
      %p52 = scmp.lt.s32.totalorder %s51, 0
      %s53 = scalar_select %p52, %s51, 0
      %s54 = smul.u32 2, %s53
      %s56 = ssub.s32 256, 256
      %57 = vsyncadd [#allocation6], %s56
      %s58 = smul.addr %s54, 128
      %s59 = scalar_lea.hbm %s2, %s58
      %s60 = sshll.u32 [#allocation7], 4
      %s61 = int_to_ptr.vmem [resolvable:$true] %s60
      %66 = dma.hbm_to_vmem [thread:$0]  %s59, 256, %s61, [#allocation6], 128, 128, 8
    $region13: #{tpu_custom_call.1} parent=1 // pred_fallthru
      _
    // Predicated region
    $region14: #{tpu_custom_call.1} parent=1 // pred_check
      _
    $region15: #{tpu_custom_call.1} parent=1 // pred_check_branch
      %68 = sbr.rel (0) target = $region17
    $region16: #{tpu_custom_call.1} parent=1 // pred_region
      %s69 = sadd.s32 0, 0
      %p70 = scmp.lt.s32.totalorder %s69, 0
      %s71 = scalar_select %p70, %s69, 0
      %s72 = smul.u32 2, %s71
      %s74 = ssub.s32 256, 256
      %75 = vsyncadd [#allocation9], %s74
      %s76 = smul.addr %s72, 128
      %s77 = scalar_lea.hbm %s3, %s76
      %s78 = sshll.u32 [#allocation8], 4
      %s79 = int_to_ptr.vmem [resolvable:$true] %s78
      %84 = dma.hbm_to_vmem [thread:$0]  %s77, 256, %s79, [#allocation9], 128, 128, 8
    $region17: #{tpu_custom_call.1} parent=1 // pred_fallthru
      _
    // Predicated region
    $region18: #{tpu_custom_call.1} parent=1 // pred_check
      _
    $region19: #{tpu_custom_call.1} parent=1 // pred_check_branch
      %86 = sbr.rel (0) target = $region21
    $region20: #{tpu_custom_call.1} parent=1 // pred_region
      %87 = dma.done [#allocation3], 256
    $region21: #{tpu_custom_call.1} parent=1 // pred_fallthru
      _
    // Predicated region
    $region22: #{tpu_custom_call.1} parent=1 // pred_check
      _
    $region23: #{tpu_custom_call.1} parent=1 // pred_check_branch
      %89 = sbr.rel (0) target = $region25
    $region24: #{tpu_custom_call.1} parent=1 // pred_region
      %90 = dma.done [#allocation6], 256
    $region25: #{tpu_custom_call.1} parent=1 // pred_fallthru
      _
    // Predicated region
    $region26: #{tpu_custom_call.1} parent=1 // pred_check
      _
    $region27: #{tpu_custom_call.1} parent=1 // pred_check_branch
      %92 = sbr.rel (0) target = $region29
    $region28: #{tpu_custom_call.1} parent=1 // pred_region
      %93 = dma.done [#allocation6], 256
    $region29: #{tpu_custom_call.1} parent=1 // pred_fallthru
      _
    // Predicated region
    $region30: #{tpu_custom_call.1} parent=1 // pred_check
      _
    $region31: #{tpu_custom_call.1} parent=1 // pred_check_branch
      %95 = sbr.rel (0) target = $region33
    $region32: #{tpu_custom_call.1} parent=1 // pred_region
      %96 = dma.done [#allocation9], 256
    $region33: #{tpu_custom_call.1} parent=1 // pred_fallthru
      _
    %s97 = sadd.s32 0, 0
    %p98 = scmp.lt.s32.totalorder %s97, 0
    %s99 = scalar_select %p98, %s97, 0
    %s100 = smul.u32 2, %s99
    %s101 = sadd.s32 0, 0
    %p102 = scmp.lt.s32.totalorder %s101, 0
    %s103 = scalar_select %p102, %s101, 0
    %s104 = smul.u32 2, %s103
    %s105 = sadd.s32 0, 0
    %p106 = scmp.lt.s32.totalorder %s105, 0
    %s107 = scalar_select %p106, %s105, 0
    %s108 = smul.u32 2, %s107
    %s109 = sadd.s32 0, 0
    %p110 = scmp.lt.s32.totalorder %s109, 0
    %s111 = scalar_select %p110, %s109, 0
    %s112 = smul.u32 2, %s111
    %p113 = scmp.eq.s32.totalorder 0, 0
    // Predicated region
    $region34: #{tpu_custom_call.1} parent=1 // pred_check
      %p114 = pneg %p113
    $region35: #{tpu_custom_call.1} parent=1 // pred_check_branch
      %116 = sbr.rel (%p114) target = $region37
    $region36: #{tpu_custom_call.1} parent=1 // pred_region
      %117 = vst [vmem:[#allocation10] sm:$0xff] 0.0
    $region37: #{tpu_custom_call.1} parent=1 // pred_fallthru
      _
    %v118 = vld [vmem:[#allocation2] sm:$0xff]
    %v119 = vld [vmem:[#allocation2 + $0x8] sm:$0xff]
    %v120 = vld [vmem:[#allocation5] sm:$0xff]
    %v121 = vld [vmem:[#allocation5 + $0x8] sm:$0xff]
    %v122 = vsub.f32 %v118, %v120
    %v123 = vsub.f32 %v119, %v121
    %v124 = vld [vmem:[#allocation7] sm:$0xff]
    %v125 = vld [vmem:[#allocation7 + $0x8] sm:$0xff]
    %v126 = vmul.f32 %v122, %v124
    %v127 = vmul.f32 %v123, %v125
    %v128 = vand.u32 2147483647, %v126
    %v129 = vand.u32 2147483647, %v127
    %vm130 = vcmp.lt.f32.partialorder %v128, 1.0
    %vm131 = vcmp.lt.f32.partialorder %v129, 1.0
    %v132 = vmul.f32 %v128, %v128
    %v133 = vmul.f32 %v129, %v129
    %v134 = vmul.f32 %v132, 0.5
    %v135 = vmul.f32 %v133, 0.5
    %v136 = vsub.f32 %v128, 0.5
    %v137 = vsub.f32 %v129, 0.5
    %v138 = vsel %vm130, %v134, %v136
    %v139 = vsel %vm131, %v135, %v137
    %v140 = vld [vmem:[#allocation8] sm:$0xff]
    %v141 = vld [vmem:[#allocation8 + $0x8] sm:$0xff]
    %v142 = vmul.f32 %v138, %v140
    %v143 = vmul.f32 %v139, %v141
    %v144 = vld [vmem:[#allocation10] sm:$0xff]
    %v145 = vadd.f32 %v142, %v143
    %v146 = vadd.f32 %v144, %v145
    %147 = vst [vmem:[#allocation10] sm:$0xff] %v146
    // Predicated region
    $region38: #{tpu_custom_call.1} parent=1 // pred_check
      _
    $region39: #{tpu_custom_call.1} parent=1 // pred_check_branch
      %149 = sbr.rel (0) target = $region41
    $region40: #{tpu_custom_call.1} parent=1 // pred_region
      %s151 = ssub.s32 128, 128
      %152 = vsyncadd [#allocation4], %s151
      %s154 = sshll.u32 [#allocation10], 4
      %s155 = int_to_ptr.vmem [resolvable:$true] %s154
      %157 = dma.vmem_to_hbm [thread:$0]  %s155, 128, %s4, [#allocation4]
    $region41: #{tpu_custom_call.1} parent=1 // pred_fallthru
      _
    // Predicated region
    $region42: #{tpu_custom_call.1} parent=1 // pred_check
      _
    $region43: #{tpu_custom_call.1} parent=1 // pred_check_branch
      %159 = sbr.rel (0) target = $region45
    $region44: #{tpu_custom_call.1} parent=1 // pred_region
      %160 = dma.done [#allocation4], 128
    $region45: #{tpu_custom_call.1} parent=1 // pred_fallthru
      _
    %161 = vsyncpa [#allocation3], 1
    %162 = vsyncpa [#allocation6], 1
    %163 = vsyncpa [#allocation9], 1
    %164 = vsyncpa [#allocation4], 1

</llo_original>
